<compile_context>
chip_gen: v7x
topology: tpu7x:2x2x1
jax: 0.10.0
libtpu: 0.0.40
codegen_flags: <defaults>
</compile_context>

<pallas_src>
import functools

import numpy as np
import jax
import jax.numpy as jnp
from jax import lax
from jax.experimental import pallas as pl
from jax.experimental.pallas import tpu as pltpu


# MXU operand dtype for the three matmuls.  jnp.bfloat16 gives ~2-4x MXU throughput on
# v6e/v7x (accumulation stays f32 via preferred_element_type) and halves kernel-1 DMA bytes,
# but relaxes accuracy to ~4e-3 relative.  Kept at f32 here so the tight 2e-3 self-check
# below remains meaningful; flip to jnp.bfloat16 deliberately if the caller tolerates it.
_MXU_DTYPE = jnp.float32


def _round_up(x, m):
    return ((x + m - 1) // m) * m


# ----------------------------------------------------------------------------- #
# Pallas kernel 1: knowledge-graph mixing of tail-class covariances, fused with the
# head-row pass-through so the full new covariance comes out of a single kernel.
#   out[:head, :] = cv_flat[:head, :]
#   out[head:, :] = kg_tail @ cv_flat
# ----------------------------------------------------------------------------- #
def _cv_mix_kernel(kg_ref, cv_ref, out_ref, *, head):
    cv = cv_ref[...]                                             # (C, tn)
    mixed = jnp.dot(kg_ref[...].astype(_MXU_DTYPE), cv.astype(_MXU_DTYPE),
                    preferred_element_type=jnp.float32)          # (T, tn) on the MXU
    if head > 0:
        out_ref[...] = jnp.concatenate([cv[:head, :], mixed], axis=0)
    else:
        out_ref[...] = mixed


def cv_mix_full(kg_tail, cv_flat, *, head):
    """Returns the full new (C, A*A) covariance matrix (head rows passed through)."""
    T, C = kg_tail.shape
    _, AA = cv_flat.shape
    # <=1024-wide tiles keep the double-buffer within v5e's 16 MiB scoped-VMEM default and
    # give >= 4 grid steps on AA = 4096 so both v7x TensorCores get pipelined work.
    tn = AA
    for cand in (512, 1024, 256, 128):
        if AA % cand == 0:
            tn = cand
            break
    kernel = functools.partial(_cv_mix_kernel, head=head)
    return pl.pallas_call(
        kernel,
        out_shape=jax.ShapeDtypeStruct((C, AA), jnp.float32),
        grid=(AA // tn,),
        in_specs=[pl.BlockSpec((T, C), lambda j: (0, 0)),        # kg tail (resident)
                  pl.BlockSpec((C, tn), lambda j: (0, j))],      # cv_flat column tile
        out_specs=pl.BlockSpec((C, tn), lambda j: (0, j)),
        compiler_params=pltpu.CompilerParams(dimension_semantics=("parallel",)),
    )(kg_tail.astype(jnp.float32), cv_flat.astype(jnp.float32))


# ----------------------------------------------------------------------------- #
# Pallas kernel 2: per-class augmentation table, TY anchor classes per grid step.
#   For anchor class y:  D = W - W[y]                                   (C, A)
#                        sigma2[c] = sum((D @ CV[y]) * D, -1)
#                        mean[c]   = D[c] . out_new[y]
#                        T_aug[y, c] = 0.5*beta*sigma2[c] + alpha*mean[c]
# The TY covariances of the block are packed along the matmul N axis so one wide MXU call
# computes W @ CV[y] for all of them; D @ CV[y] is recovered with a rank-1 correction.
# ----------------------------------------------------------------------------- #
def _aug_table_kernel(w_ref, cv_ref, mu_ref, out_ref, *, alpha, beta, ty, num_classes):
    base = pl.program_id(0) * ty
    W = w_ref[...]                                               # (C, A) resident fc weight
    A = W.shape[1]
    # Pack the TY covariances along the MXU N axis:  P = W @ [CV[y0] | CV[y1] | ...]
    cvcat = jnp.concatenate([cv_ref[t] for t in range(ty)], axis=-1)      # (A, TY*A)
    P = jnp.dot(W.astype(_MXU_DTYPE), cvcat.astype(_MXU_DTYPE),
                preferred_element_type=jnp.float32)              # (C, TY*A) one wide matmul

    rows = []
    for t in range(ty):                                          # static unrolled (ty <= 32)
        y = jnp.minimum(base + t, num_classes - 1)               # clamp padded anchor rows
        Wy = w_ref[pl.ds(y, 1), :]                               # (1, A) dynamic row of W
        D = W - Wy                                               # (C, A)
        by = jnp.dot(Wy.astype(_MXU_DTYPE), cv_ref[t].astype(_MXU_DTYPE),
                     preferred_element_type=jnp.float32)         # (1, A) rank-1 correction
        S = P[:, t * A:(t + 1) * A] - by                         # = D @ CV[y]
        sig = jnp.sum(S * D, axis=-1)                            # (C,) rowwise reduce
        mean = jnp.sum(D * mu_ref[pl.ds(t, 1), :], axis=-1)      # (C,)
        row = (0.5 * beta) * sig + alpha * mean
        rows.append(row.reshape(1, -1))                          # (1, C)
    out_ref[...] = jnp.concatenate(rows, axis=0)                 # lane-dense (TY, C) store


def build_aug_table(W, cv, out_new, *, alpha, beta):
    C, A = W.shape
    # Class-row block TY: whole table in one step when C is small; otherwise a multiple of 8
    # (sublane-tiling rule) sized so the packed (C, TY*A) intermediate stays modest.
    if C <= 32:
        ty = C
    else:
        ty = 8
        for cand in (32, 16):
            if C % cand == 0 and C * cand * A * 4 <= 8 * 1024 * 1024:
                ty = cand
                break
    Cp = _round_up(C, ty)

    cv_f = cv.astype(jnp.float32)
    mu_f = out_new.astype(jnp.float32)
    if Cp != C:   # pad the anchor-class (row) axis only; padded rows are sliced off below
        cv_f = jnp.concatenate([cv_f, jnp.zeros((Cp - C, A, A), jnp.float32)], axis=0)
        mu_f = jnp.concatenate([mu_f, jnp.zeros((Cp - C, A), jnp.float32)], axis=0)

    kernel = functools.partial(_aug_table_kernel, alpha=float(alpha), beta=float(beta),
                               ty=ty, num_classes=C)
    table = pl.pallas_call(
        kernel,
        out_shape=jax.ShapeDtypeStruct((Cp, C), jnp.float32),
        grid=(Cp // ty,),
        in_specs=[pl.BlockSpec((C, A), lambda j: (0, 0)),        # W (resident)
                  pl.BlockSpec((ty, A, A), lambda j: (j, 0, 0)),  # TY covariances
                  pl.BlockSpec((ty, A), lambda j: (j, 0))],       # TY rows of out_new
        out_specs=pl.BlockSpec((ty, C), lambda j: (j, 0)),        # lane-dense slab
        compiler_params=pltpu.CompilerParams(dimension_semantics=("parallel",)),
    )(W.astype(jnp.float32), cv_f, mu_f)
    return table[:C] if Cp != C else table                       # table[y, c]


# ----------------------------------------------------------------------------- #
# Pallas kernel 3: N-blocked logit augmentation + per-sample weighted-CE terms.
#   aug = y_s + T_aug[label]   (row gather = one-hot @ table on the MXU)
#   wnll[n] = weight[label_n] * (logsumexp(aug_n) - aug_n[label_n]);  wsum[n] = weight[label_n]
# Out-of-range labels (used for row padding) give an all-zero one-hot -> zero contribution.
# ----------------------------------------------------------------------------- #
def _augment_ce_kernel(lab_ref, ys_ref, tab_ref, wt_ref,
                       aug_ref, wnll_ref, wsum_ref, *, C):
    labels = lab_ref[...]                                              # (TN, 1) int32
    lane = lax.broadcasted_iota(jnp.int32, (labels.shape[0], C), 1)
    onehot = (lane == labels).astype(jnp.float32)                      # (TN, C)
    # TODO(synk): for very large C (>= ~2k) replace the one-hot MXU gather below with a
    # per-row dynamic gather from the resident table (O(TN*C) instead of O(TN*C^2)).
    gathered = jnp.dot(onehot.astype(tab_ref.dtype), tab_ref[...],
                       preferred_element_type=jnp.float32)             # (TN, C)
    aug = ys_ref[...] + gathered
    aug_ref[...] = aug                                                 # lane-dense store

    m = jnp.max(aug, axis=-1, keepdims=True)                           # (TN, 1)
    lse = m + jnp.log(jnp.sum(jnp.exp(aug - m), axis=-1, keepdims=True))
    logit_y = jnp.sum(onehot * aug, axis=-1, keepdims=True)
    w_y = jnp.sum(onehot * wt_ref[...], axis=-1, keepdims=True)        # 0 for padded rows
    wnll_ref[...] = w_y * (lse - logit_y)
    wsum_ref[...] = w_y


def fsda_ce_pallas(W, y_s, labels, cv, out_new, class_weights, *, alpha, beta,
                   tile_n=256):
    C, A = W.shape
    N = y_s.shape[0]

    # Stage 1: per-class combined table (label-dependent work hoisted out of the batch).
    table = build_aug_table(W, cv, out_new, alpha=alpha, beta=beta)

    # Stage 2: N-tiled augment + CE terms.  Prefer 256-512-row tiles (HBM-bound kernel),
    # shrink if the pipeline buffers for huge C would blow scoped VMEM, and prefer a tile
    # that divides N so no padding copy is needed at all.
    tn = tile_n
    while tn > 128 and 6 * tn * C * 4 > 24 * 1024 * 1024:
        tn //= 2
    if N <= tn:
        tn = max(8, _round_up(N, 8))
    else:
        for cand in (tn, tn // 2, 256, 128):
            if cand >= 128 and N % cand == 0:
                tn = cand
                break
    Np = _round_up(N, tn)

    ys_f = y_s.astype(jnp.float32)
    lab_i = labels.astype(jnp.int32).reshape(N, 1)
    if Np != N:
        ys_f = jnp.concatenate([ys_f, jnp.zeros((Np - N, C), jnp.float32)], axis=0)
        # Padded labels are OUT OF RANGE (== C) -> all-zero one-hot -> zero wnll/wsum.
        lab_i = jnp.concatenate([lab_i, jnp.full((Np - N, 1), C, jnp.int32)], axis=0)

    kernel = functools.partial(_augment_ce_kernel, C=C)
    aug_p, wnll, wsum = pl.pallas_call(
        kernel,
        out_shape=(jax.ShapeDtypeStruct((Np, C), jnp.float32),
                   jax.ShapeDtypeStruct((Np, 1), jnp.float32),
                   jax.ShapeDtypeStruct((Np, 1), jnp.float32)),
        grid=(Np // tn,),
        in_specs=[pl.BlockSpec((tn, 1), lambda i: (i, 0)),   # labels
                  pl.BlockSpec((tn, C), lambda i: (i, 0)),   # y_s tile
                  pl.BlockSpec((C, C), lambda i: (0, 0)),    # T_aug (resident)
                  pl.BlockSpec((1, C), lambda i: (0, 0))],   # class weights
        out_specs=[pl.BlockSpec((tn, C), lambda i: (i, 0)),
                   pl.BlockSpec((tn, 1), lambda i: (i, 0)),
                   pl.BlockSpec((tn, 1), lambda i: (i, 0))],
        compiler_params=pltpu.CompilerParams(dimension_semantics=("parallel",)),
    )(lab_i, ys_f, table.astype(_MXU_DTYPE),
      class_weights.reshape(1, C).astype(jnp.float32))

    # Padded rows contribute exactly zero, so no [:N] slice/re-read of the streams is needed.
    loss = jnp.sum(wnll) / jnp.sum(wsum)
    aug = aug_p if Np == N else aug_p[:N]
    return aug, loss


# ----------------------------------------------------------------------------- #
# Module wrapper (parameter/state setup and EstimatorCV bookkeeping = plain JAX glue).
# ----------------------------------------------------------------------------- #
class FSDA_CE:
    def __init__(self, feature_num, class_num, cls_num_list, max_m=0.5, s=30):
        self.feature_num = feature_num
        self.class_num = class_num
        # EstimatorCV state
        self.CoVariance = jnp.zeros((class_num, feature_num, feature_num), jnp.float32)
        self.Ave = jnp.zeros((class_num, feature_num), jnp.float32)
        self.Amount = jnp.zeros((class_num,), jnp.float32)
        # m_list / s: computed for parity with the torch module (unused in forward)
        m_list = 1.0 / np.sqrt(np.sqrt(np.asarray(cls_num_list, dtype=np.float64)))
        m_list = m_list * (max_m / np.max(m_list))
        self.m_list = jnp.asarray(m_list, jnp.float32)
        assert s > 0
        self.s = s

    # TODO(synk): running-covariance update kept in plain JAX (stateful scatter-by-label
    # bookkeeping; not a Pallas hot path).
    def update_CV(self, features, labels):
        N, A = features.shape
        C = self.class_num
        onehot = jax.nn.one_hot(labels, C, dtype=jnp.float32)                  # (N, C)
        feats_by_sort = features[:, None, :] * onehot[:, :, None]              # (N, C, A)
        cnt = onehot.sum(0)                                                    # (C,)
        Amount_CxA = jnp.broadcast_to(cnt[:, None], (C, A))
        Amount_CxA = jnp.where(Amount_CxA == 0, 1.0, Amount_CxA)
        ave_CxA = feats_by_sort.sum(0) / Amount_CxA                            # (C, A)
        var_temp = feats_by_sort - ave_CxA[None] * onehot[:, :, None]          # (N, C, A)
        var_temp = jnp.einsum('nca,ncb->cab', var_temp, var_temp) / Amount_CxA[:, :, None]
        weight_CV = cnt[:, None, None] / (cnt[:, None, None] + self.Amount[:, None, None])
        weight_CV = jnp.where(jnp.isnan(weight_CV), 0.0, weight_CV)
        weight_AV = cnt[:, None] / (cnt[:, None] + self.Amount[:, None])
        weight_AV = jnp.where(jnp.isnan(weight_AV), 0.0, weight_AV)
        delta = self.Ave - ave_CxA
        additional_CV = weight_CV * (1.0 - weight_CV) * jnp.einsum('ca,cb->cab', delta, delta)
        self.CoVariance = self.CoVariance * (1.0 - weight_CV) + var_temp * weight_CV + additional_CV
        self.Ave = self.Ave * (1.0 - weight_AV) + ave_CxA * weight_AV
        self.Amount = self.Amount + cnt

    def get_cv(self):
        return self.CoVariance

    def update_cv(self, cv):
        self.CoVariance = cv

    def forward(self, fc_weight, features, y_s, labels, alpha, weights, cv, manner,
                kg, out_new, feature_mean, beta, head):
        # manner / feature_mean / cv argument are unused (parity with the torch forward).
        self.update_CV(lax.stop_gradient(features), labels)
        C = self.class_num
        tail = C - head
        cv_var = self.get_cv()
        if tail > 0:
            # One fused pass: head rows pass through, tail rows mixed by kg on the MXU.
            new_cv_flat = cv_mix_full(kg[head:], cv_var.reshape(C, -1), head=head)
            new_cv = new_cv_flat.reshape(C, 64, -1)          # hardcoded 64; A must be 64
        else:
            new_cv = cv_var
        self.CoVariance = new_cv
        aug_y, loss = fsda_ce_pallas(fc_weight, y_s, labels, new_cv, out_new, weights,
                                     alpha=alpha, beta=beta)
        return loss, aug_y


# ----------------------------------------------------------------------------- #
# Pure-JAX reference of the FSDA + weighted CE hot path (for a sanity check).
# ----------------------------------------------------------------------------- #
def _fsda_ce_ref(W, y_s, labels, cv, out_new, class_w, alpha, beta):
    Wy = W[labels]                                   # (N, A)
    D = W[None, :, :] - Wy[:, None, :]               # (N, C, A)
    CVy = cv[labels]                                 # (N, A, A)
    sigma2 = beta * jnp.einsum('nca,nab,ncb->nc', D, CVy, D)
    mean_term = jnp.einsum('nca,na->nc', D, out_new[labels])
    aug = y_s + 0.5 * sigma2 + alpha * mean_term
    logp = jax.nn.log_softmax(aug, axis=1)
    nll = -jnp.take_along_axis(logp, labels[:, None], axis=1)[:, 0]
    w = class_w[labels]
    return aug, jnp.sum(w * nll) / jnp.sum(w)


if __name__ == "__main__":
    N, A, C, head = 16, 64, 8, 4       # A must be 64 (hardcoded view in the module)
    cls_num_list = [100, 80, 60, 40, 20, 10, 5, 2]
    alpha, beta = 0.5, 0.2

    key = jax.random.PRNGKey(0)
    k1, k2, k3, k4, k5, k6, k7 = jax.random.split(key, 7)
    features = jax.random.normal(k1, (N, A), jnp.float32)
    labels = jax.random.randint(k2, (N,), 0, C).astype(jnp.int32)
    fc_weight = 0.1 * jax.random.normal(k3, (C, A), jnp.float32)     # fc.weight  (C, A)
    y_s = features @ fc_weight.T                                     # logits (N, C)
    kg = jax.nn.softmax(jax.random.normal(k4, (C, C), jnp.float32), axis=1)
    out_new = 0.1 * jax.random.normal(k5, (C, A), jnp.float32)
    feature_mean = jax.random.normal(k6, (C, A), jnp.float32)        # unused in forward
    weights = jax.random.uniform(k7, (C,), jnp.float32, 0.5, 1.5)    # per-class CE weights

    module = FSDA_CE(A, C, cls_num_list)
    loss, aug = module.forward(fc_weight, features, y_s, labels, alpha, weights,
                               None, None, kg, out_new, feature_mean, beta, head)
    loss = jax.block_until_ready(loss)
    aug = jax.block_until_ready(aug)

    # Sanity check against a pure-JAX reference using the same (post-update) covariance.
    aug_ref, loss_ref = _fsda_ce_ref(fc_weight, y_s, labels, module.CoVariance,
                                     out_new, weights, alpha, beta)
    np.testing.assert_allclose(np.asarray(aug), np.asarray(aug_ref), rtol=2e-3, atol=2e-3)
    np.testing.assert_allclose(float(loss), float(loss_ref), rtol=2e-3, atol=2e-3)

    print("KERNEL_OK")
</pallas_src>

<mosaic_0001>
module attributes {stable_mosaic.version = 11 : i64} {
  func.func @_cv_mix_kernel(%arg0: i32, %arg1: memref<4x8xf32, #tpu.memory_space<vmem>>, %arg2: memref<8x512xf32, #tpu.memory_space<vmem>>, %arg3: memref<8x512xf32, #tpu.memory_space<vmem>>) attributes {dimension_semantics = [#tpu.dimension_semantics<parallel>], iteration_bounds = array<i64: 8>, scalar_prefetch = 0 : i64, scratch_operands = 0 : i64, tpu.core_type = #tpu.core_type<tc>, window_params = [{pipeline_mode = #tpu.pipeline_mode<synchronous>, transform_indices = @transform_0, window_bounds = array<i64: 4, 8>}, {transform_indices = @transform_1, window_bounds = array<i64: 8, 512>}, {transform_indices = @transform_2, window_bounds = array<i64: 8, 512>}]} {
    %c0 = arith.constant 0 : index
    %c0_0 = arith.constant 0 : index
    %0 = vector.load %arg2[%c0, %c0_0] : memref<8x512xf32, #tpu.memory_space<vmem>>, vector<8x512xf32>
    %c0_1 = arith.constant 0 : index
    %c0_2 = arith.constant 0 : index
    %1 = vector.load %arg1[%c0_1, %c0_2] : memref<4x8xf32, #tpu.memory_space<vmem>>, vector<4x8xf32>
    %cst = arith.constant dense<0.000000e+00> : vector<4x512xf32>
    %2 = tpu.matmul %1, %0, %cst {dimension_numbers = #tpu.dot_dimension_numbers<[1], [0], [0], [1], [0, 0, 1, 1], [], []>} : vector<4x8xf32>, vector<8x512xf32>, vector<4x512xf32> -> vector<4x512xf32>
    %3 = vector.extract_strided_slice %0 {offsets = [0, 0], sizes = [4, 512], strides = [1, 1]} : vector<8x512xf32> to vector<4x512xf32>
    %4 = tpu.concatenate %3, %2 in 0 : vector<4x512xf32>, vector<4x512xf32> -> vector<8x512xf32>
    %c0_3 = arith.constant 0 : index
    %c0_4 = arith.constant 0 : index
    %5 = vector.load %arg3[%c0_3, %c0_4] : memref<8x512xf32, #tpu.memory_space<vmem>>, vector<8x512xf32>
    tpu.vector_store %arg3[%c0_3, %c0_4], %4 {strides = array<i32>} : memref<8x512xf32, #tpu.memory_space<vmem>>, vector<8x512xf32>,
    return
  }
  func.func @transform_0(%arg0: i32) -> (i32, i32) {
    %c0_i32 = arith.constant 0 : i32
    %c0_i32_0 = arith.constant 0 : i32
    %c0_i32_1 = arith.constant 0 : i32
    return %c0_i32, %c0_i32_0 : i32, i32
  }
  func.func @transform_1(%arg0: i32) -> (i32, i32) {
    %c0_i32 = arith.constant 0 : i32
    %c0_i32_0 = arith.constant 0 : i32
    return %c0_i32, %arg0 : i32, i32
  }
  func.func @transform_2(%arg0: i32) -> (i32, i32) {
    %c0_i32 = arith.constant 0 : i32
    %c0_i32_0 = arith.constant 0 : i32
    return %c0_i32, %arg0 : i32, i32
  }
}

</mosaic_0001>

<llo_original>
// kernel: tpu_custom_call.1
$region0: #{tpu_custom_call.1}
  #allocation0 [shape = 'u32[]', space=smem, size = 0x4, offset = 0x4, fixed_abs, tag = 'smem constant byte address 0x4 - core index']
  #allocation1 [shape = 'u32[144,128]{1,0:T(1,128)}', space=vmem, size = 0x12000, scoped, tag = 'internal scratch']
  %s0 = inlined_call_operand.hbm [shape: f32[4,8], index: 0, kind: input, shape index: {}]
  %s1 = inlined_call_operand.hbm [shape: f32[8,4096], index: 1, kind: input, shape index: {}]
  %s2 = inlined_call_operand.hbm [shape: f32[8,4096], index: 2, kind: output, shape index: {}]
  %s3 = sld [smem:[#allocation0]]
  $region49: #{tpu_custom_call.1} parent=0
    _
  %s5 = ssub.s32 1, %s3
  %s6 = scalar_select 0, %s5, %s3
  $region1: #{tpu_custom_call.1} parent=0
    #allocation2 [shape = 'u8[2048]{0}', space=vmem, size = 0x800, scoped, tag = 'input window, operand 0, single buffered']
    #allocation3 [shape = 's32[2]{0}', space=sflag, size = 0x8, scoped, tag = 'scoped memory for tpu_custom_call.1']
    #allocation4 [shape = 's32[2]{0}', space=sflag, size = 0x8, scoped, tag = 'scoped memory for tpu_custom_call.1']
    #allocation5 [shape = 'u8[32768]{0}', space=vmem, size = 0x8000, scoped, tag = 'input window, operand 1']
    #allocation6 [shape = 's32[2]{0}', space=sflag, size = 0x8, scoped, tag = 'scoped memory for tpu_custom_call.1']
    #allocation7 [shape = 'u8[32768]{0}', space=vmem, size = 0x8000, scoped, tag = 'output window, operand 0']
    %7 = vsyncpa [#allocation3], 0
    %8 = vsyncpa [#allocation6], 0
    %s9 = scalar_lea.sflag [#allocation6], 1
    %10 = vsyncpa %s9, 0
    %11 = vsyncpa [#allocation4], 0
    %s12 = scalar_lea.sflag [#allocation4], 1
    %13 = vsyncpa %s12, 0
    loop: start=0, step=1, limit=10
    $region2: #{tpu_custom_call.1} parent=1 // loop_pre_header
      _
    $region3: #{tpu_custom_call.1} parent=1 // loop_header
      %s15 = sphi 0, %s19
      %p16 = scmp.ge.s32.totalorder %s15, 10
      %s23 = sphi 0, %s23
      %s25 = sphi 0, %s23
      %s26 = sphi 0, %s25
      %s40 = sphi 0, %s26
      %s46 = sphi 0, %s48
      %s49 = sphi 0, %s46
      %s50 = sphi 0, %s49
      %s66 = sphi 0, %s50
      %s72 = sphi 0, %s74
      %s75 = sphi 0, %s72
      %s76 = sphi 0, %s75
      %s92 = sphi 0, %s76
    $region4: #{tpu_custom_call.1} parent=1 // loop_header_branch
      %18 = sbr.rel (%p16) target = $region8
    $region5: #{tpu_custom_call.1} parent=1 // loop_body
      %s20 = ssub.s32 %s15, 1
      %s21 = ssub.s32 %s15, 2
      %s22 = sadd.s32 %s15, 1
      %s24 = sadd.s32 %s23, 1
      %p27 = scmp.eq.s32.totalorder %s15, 7
      %p28 = scmp.ne.s32.totalorder %s23, %s25
      %p29 = scmp.eq.s32.totalorder %s15, 0
      %p30 = por %p28, %p29
      %p31 = scmp.ne.s32.totalorder %s23, %s25
      %p32 = scmp.eq.s32.totalorder %s20, 7
      %p33 = por %p31, %p32
      %p34 = scmp.ne.s32.totalorder %s25, %s26
      %p35 = scmp.eq.s32.totalorder %s20, 0
      %p36 = por %p34, %p35
      %p37 = scmp.ne.s32.totalorder %s25, %s26
      %p38 = scmp.eq.s32.totalorder %s21, 7
      %p39 = por %p37, %p38
      %p41 = scmp.ne.s32.totalorder %s26, %s40
      %p42 = scmp.eq.s32.totalorder %s21, 0
      %p43 = por %p41, %p42
      %s44 = ssub.s32 %s15, %s22
      %p45 = scmp.eq.s32.totalorder %s44, 0
      %s47 = sadd.s32 %s46, 1
      %s48 = scalar_select %p45, %s46, %s47
      %p51 = pneg %p45
      %p52 = scmp.eq.s32.totalorder %s15, 7
      %p53 = por %p51, %p52
      %p54 = scmp.ne.s32.totalorder %s46, %s49
      %p55 = scmp.eq.s32.totalorder %s15, 0
      %p56 = por %p54, %p55
      %p57 = scmp.ne.s32.totalorder %s46, %s49
      %p58 = scmp.eq.s32.totalorder %s20, 7
      %p59 = por %p57, %p58
      %p60 = scmp.ne.s32.totalorder %s49, %s50
      %p61 = scmp.eq.s32.totalorder %s20, 0
      %p62 = por %p60, %p61
      %p63 = scmp.ne.s32.totalorder %s49, %s50
      %p64 = scmp.eq.s32.totalorder %s21, 7
      %p65 = por %p63, %p64
      %p67 = scmp.ne.s32.totalorder %s50, %s66
      %p68 = scmp.eq.s32.totalorder %s21, 0
      %p69 = por %p67, %p68
      %s70 = ssub.s32 %s15, %s22
      %p71 = scmp.eq.s32.totalorder %s70, 0
      %s73 = sadd.s32 %s72, 1
      %s74 = scalar_select %p71, %s72, %s73
      %p77 = pneg %p71
      %p78 = scmp.eq.s32.totalorder %s15, 7
      %p79 = por %p77, %p78
      %p80 = scmp.ne.s32.totalorder %s72, %s75
      %p81 = scmp.eq.s32.totalorder %s15, 0
      %p82 = por %p80, %p81
      %p83 = scmp.ne.s32.totalorder %s72, %s75
      %p84 = scmp.eq.s32.totalorder %s20, 7
      %p85 = por %p83, %p84
      %p86 = scmp.ne.s32.totalorder %s75, %s76
      %p87 = scmp.eq.s32.totalorder %s20, 0
      %p88 = por %p86, %p87
      %p89 = scmp.ne.s32.totalorder %s75, %s76
      %p90 = scmp.eq.s32.totalorder %s21, 7
      %p91 = por %p89, %p90
      %p93 = scmp.ne.s32.totalorder %s76, %s92
      %p94 = scmp.eq.s32.totalorder %s21, 0
      %p95 = por %p93, %p94
      %p96 = scmp.le.s32.totalorder 1, %s15
      %p97 = scmp.lt.s32.totalorder %s15, 9
      %p98 = pnand %p96, %p97
      %p99 = pneg %p98
      // Predicated region
      $region9: #{tpu_custom_call.1} parent=5 // pred_check
        _
      $region10: #{tpu_custom_call.1} parent=5 // pred_check_branch
        %101 = sbr.rel (%p98) target = $region12
      $region11: #{tpu_custom_call.1} parent=5 // pred_region
        %s102 = ssub.s32 %s15, 1
        // Predicated region
        $region13: #{tpu_custom_call.1} parent=11 // pred_check
          %p103 = pneg %p36
        $region14: #{tpu_custom_call.1} parent=11 // pred_check_branch
          %105 = sbr.rel (%p103) target = $region16
        $region15: #{tpu_custom_call.1} parent=11 // pred_region
          %s107 = ssub.s32 64, 64
          %108 = vsyncadd [#allocation3], %s107
          %s110 = sshll.u32 [#allocation2], 4
          %s111 = int_to_ptr.vmem [resolvable:$true] %s110
          %113 = dma.hbm_to_vmem [thread:$0]  %s0, 64, %s111, [#allocation3]
        $region16: #{tpu_custom_call.1} parent=11 // pred_fallthru
          _
      $region12: #{tpu_custom_call.1} parent=5 // pred_fallthru
        _
      %p114 = scmp.lt.s32.totalorder %s15, 8
      // Predicated region
      $region17: #{tpu_custom_call.1} parent=5 // pred_check
        %p115 = pneg %p114
      $region18: #{tpu_custom_call.1} parent=5 // pred_check_branch
        %117 = sbr.rel (%p115) target = $region20
      $region19: #{tpu_custom_call.1} parent=5 // pred_region
        // Predicated region
        $region21: #{tpu_custom_call.1} parent=19 // pred_check
          %p118 = pneg %p56
        $region22: #{tpu_custom_call.1} parent=19 // pred_check_branch
          %120 = sbr.rel (%p118) target = $region24
        $region23: #{tpu_custom_call.1} parent=19 // pred_region
          %s121 = sand.u32 %s46, 1
          %s122 = scalar_lea.sflag [#allocation6], %s121
          %s123 = sand.u32 %s46, 1
          %s124 = smul.addr %s123, 32
          %s125 = scalar_lea.vmem [#allocation5], %s124
          %s126 = smul.u32 4, %s15
          %s128 = ssub.s32 512, 512
          %129 = vsyncadd %s122, %s128
          %s130 = smul.addr %s126, 128
          %s131 = scalar_lea.hbm %s1, %s130
          %s133 = sshll.u32 %s125, 4
          %s134 = int_to_ptr.vmem [resolvable:$true] %s133
          %136 = dma.hbm_to_vmem [thread:$0]  %s131, 512, %s134, %s122
        $region24: #{tpu_custom_call.1} parent=19 // pred_fallthru
          _
      $region20: #{tpu_custom_call.1} parent=5 // pred_fallthru
        _
      %p137 = scmp.le.s32.totalorder 1, %s15
      %p138 = scmp.lt.s32.totalorder %s15, 9
      %p139 = pnand %p137, %p138
      %p140 = pneg %p139
      // Predicated region
      $region25: #{tpu_custom_call.1} parent=5 // pred_check
        _
      $region26: #{tpu_custom_call.1} parent=5 // pred_check_branch
        %142 = sbr.rel (%p139) target = $region28
      $region27: #{tpu_custom_call.1} parent=5 // pred_region
        %s143 = ssub.s32 %s15, 1
        // Predicated region
        $region29: #{tpu_custom_call.1} parent=27 // pred_check
          %p144 = pneg %p36
        $region30: #{tpu_custom_call.1} parent=27 // pred_check_branch
          %146 = sbr.rel (%p144) target = $region32
        $region31: #{tpu_custom_call.1} parent=27 // pred_region
          %147 = dma.done [#allocation3], 64
        $region32: #{tpu_custom_call.1} parent=27 // pred_fallthru
          _
        %s148 = sand.u32 %s49, 1
        %s149 = scalar_lea.sflag [#allocation6], %s148
        %s150 = sand.u32 %s49, 1
        %s151 = smul.addr %s150, 32
        %s152 = scalar_lea.vmem [#allocation5], %s151
        // Predicated region
        $region33: #{tpu_custom_call.1} parent=27 // pred_check
          %p153 = pneg %p62
        $region34: #{tpu_custom_call.1} parent=27 // pred_check_branch
          %155 = sbr.rel (%p153) target = $region36
        $region35: #{tpu_custom_call.1} parent=27 // pred_region
          %156 = dma.done %s149, 512
        $region36: #{tpu_custom_call.1} parent=27 // pred_fallthru
          _
        %p157 = pneg %p36
        %p158 = pneg %p33
        %s159 = sand.u32 %s49, 1
        %s160 = scalar_lea.sflag [#allocation6], %s159
        %s161 = sand.u32 %s49, 1
        %s162 = smul.addr %s161, 32
        %s163 = scalar_lea.vmem [#allocation5], %s162
        %p164 = pneg %p62
        %p165 = pneg %p59
        %p166 = pneg %p88
        %p167 = pneg %p85
        %s168 = sand.u32 %s75, 1
        %s169 = scalar_lea.sflag [#allocation4], %s168
        %s170 = sand.u32 %s75, 1
        %s171 = smul.addr %s170, 32
        %s172 = scalar_lea.vmem [#allocation7], %s171
        %s173 = smul.u32 4, %s20
        %s174 = smul.u32 4, %s20
        %v175 = vld [vmem:[%s152] sm:$0xff]
        %v176 = vld [vmem:[%s152 + $0x8] sm:$0xff]
        %v177 = vld [vmem:[%s152 + $0x10] sm:$0xff]
        %v178 = vld [vmem:[%s152 + $0x18] sm:$0xff]
        %v179 = vld [vmem:[#allocation2] sm:$0xf]
        %vm180 = vcmask 64512
        %v182 = vsel %vm180, %v179, 0
        %184 = vmatprep.subr.mxu0 %v176
        %185 = vmatpush1.msra.mxu0 %v175
        %186 = vmatprep.subr.mxu0 0.0
        %187 = vmatpush1.msra.mxu0 0.0
        %188 = vmatprep.subr.mxu0 0.0
        %189 = vmatpush1.msra.mxu0 0.0
        %190 = vmatprep.subr.mxu0 0.0
        %191 = vmatpush1.msra.mxu0 0.0
        %192 = vmatprep.subr.mxu0 0.0
        %193 = vmatpush1.msra.mxu0 0.0
        %194 = vmatprep.subr.mxu0 0.0
        %195 = vmatpush1.msra.mxu0 0.0
        %196 = vmatprep.subr.mxu0 0.0
        %197 = vmatpush1.msra.mxu0 0.0
        %198 = vmatprep.subr.mxu0 0.0
        %199 = vmatpush1.msra.mxu0 0.0
        %200 = vmatprep.subr.mxu0 0.0
        %201 = vmatpush1.msra.mxu0 0.0
        %202 = vmatprep.subr.mxu0 0.0
        %203 = vmatpush1.msra.mxu0 0.0
        %204 = vmatprep.subr.mxu0 0.0
        %205 = vmatpush1.msra.mxu0 0.0
        %206 = vmatprep.subr.mxu0 0.0
        %207 = vmatpush1.msra.mxu0 0.0
        %208 = vmatprep.subr.mxu0 0.0
        %209 = vmatpush1.msra.mxu0 0.0
        %210 = vmatprep.subr.mxu0 0.0
        %211 = vmatpush1.msra.mxu0 0.0
        %212 = vmatprep.subr.mxu0 0.0
        %213 = vmatpush1.msra.mxu0 0.0
        %214 = vmatprep.subr.mxu0 0.0
        %215 = vmatpush1.msra.mxu0 0.0
        %216 = vmatprep.subr.mxu0 0.0
        %217 = vmatpush1.msra.mxu0 0.0
        %218 = vmatprep.subr.mxu0 0.0
        %219 = vmatpush1.msra.mxu0 0.0
        %220 = vmatprep.subr.mxu0 0.0
        %221 = vmatpush1.msra.mxu0 0.0
        %222 = vmatprep.subr.mxu0 0.0
        %223 = vmatpush1.msra.mxu0 0.0
        %224 = vmatprep.subr.mxu0 0.0
        %225 = vmatpush1.msra.mxu0 0.0
        %226 = vmatprep.subr.mxu0 0.0
        %227 = vmatpush1.msra.mxu0 0.0
        %228 = vmatprep.subr.mxu0 0.0
        %229 = vmatpush1.msra.mxu0 0.0
        %230 = vmatprep.subr.mxu0 0.0
        %231 = vmatpush1.msra.mxu0 0.0
        %232 = vmatprep.subr.mxu0 0.0
        %233 = vmatpush1.msra.mxu0 0.0
        %234 = vmatprep.subr.mxu0 0.0
        %235 = vmatpush1.msra.mxu0 0.0
        %236 = vmatprep.subr.mxu0 0.0
        %237 = vmatpush1.msra.mxu0 0.0
        %238 = vmatprep.subr.mxu0 0.0
        %239 = vmatpush1.msra.mxu0 0.0
        %240 = vmatprep.subr.mxu0 0.0
        %241 = vmatpush1.msra.mxu0 0.0
        %242 = vmatprep.subr.mxu0 0.0
        %243 = vmatpush1.msra.mxu0 0.0
        %244 = vmatprep.subr.mxu0 0.0
        %245 = vmatpush1.msra.mxu0 0.0
        %246 = vmatprep.subr.mxu0 0.0
        %247 = vmatpush1.msra.mxu0 0.0
        %248 = vmatprep.mubr.f32.mxu0 0.0
        %249 = vmatmul.mubr.f32.gmra.mrb[0].mxu0 %v182
        %v250 = vpop.f32.mrb[0].mxu0
        %v251 = vadd.f32 0.0, %v250
        %v252 = vpop.f32.mrb[0].mxu0
        %v253 = vadd.f32 0.0, %v252
        %254 = vdwg.mxu0
        %255 = vmatprep.subr.mxu0 %v178
        %256 = vmatpush1.msra.mxu0 %v177
        %257 = vmatprep.subr.mxu0 0.0
        %258 = vmatpush1.msra.mxu0 0.0
        %259 = vmatprep.subr.mxu0 0.0
        %260 = vmatpush1.msra.mxu0 0.0
        %261 = vmatprep.subr.mxu0 0.0
        %262 = vmatpush1.msra.mxu0 0.0
        %263 = vmatprep.subr.mxu0 0.0
        %264 = vmatpush1.msra.mxu0 0.0
        %265 = vmatprep.subr.mxu0 0.0
        %266 = vmatpush1.msra.mxu0 0.0
        %267 = vmatprep.subr.mxu0 0.0
        %268 = vmatpush1.msra.mxu0 0.0
        %269 = vmatprep.subr.mxu0 0.0
        %270 = vmatpush1.msra.mxu0 0.0
        %271 = vmatprep.subr.mxu0 0.0
        %272 = vmatpush1.msra.mxu0 0.0
        %273 = vmatprep.subr.mxu0 0.0
        %274 = vmatpush1.msra.mxu0 0.0
        %275 = vmatprep.subr.mxu0 0.0
        %276 = vmatpush1.msra.mxu0 0.0
        %277 = vmatprep.subr.mxu0 0.0
        %278 = vmatpush1.msra.mxu0 0.0
        %279 = vmatprep.subr.mxu0 0.0
        %280 = vmatpush1.msra.mxu0 0.0
        %281 = vmatprep.subr.mxu0 0.0
        %282 = vmatpush1.msra.mxu0 0.0
        %283 = vmatprep.subr.mxu0 0.0
        %284 = vmatpush1.msra.mxu0 0.0
        %285 = vmatprep.subr.mxu0 0.0
        %286 = vmatpush1.msra.mxu0 0.0
        %287 = vmatprep.subr.mxu0 0.0
        %288 = vmatpush1.msra.mxu0 0.0
        %289 = vmatprep.subr.mxu0 0.0
        %290 = vmatpush1.msra.mxu0 0.0
        %291 = vmatprep.subr.mxu0 0.0
        %292 = vmatpush1.msra.mxu0 0.0
        %293 = vmatprep.subr.mxu0 0.0
        %294 = vmatpush1.msra.mxu0 0.0
        %295 = vmatprep.subr.mxu0 0.0
        %296 = vmatpush1.msra.mxu0 0.0
        %297 = vmatprep.subr.mxu0 0.0
        %298 = vmatpush1.msra.mxu0 0.0
        %299 = vmatprep.subr.mxu0 0.0
        %300 = vmatpush1.msra.mxu0 0.0
        %301 = vmatprep.subr.mxu0 0.0
        %302 = vmatpush1.msra.mxu0 0.0
        %303 = vmatprep.subr.mxu0 0.0
        %304 = vmatpush1.msra.mxu0 0.0
        %305 = vmatprep.subr.mxu0 0.0
        %306 = vmatpush1.msra.mxu0 0.0
        %307 = vmatprep.subr.mxu0 0.0
        %308 = vmatpush1.msra.mxu0 0.0
        %309 = vmatprep.subr.mxu0 0.0
        %310 = vmatpush1.msra.mxu0 0.0
        %311 = vmatprep.subr.mxu0 0.0
        %312 = vmatpush1.msra.mxu0 0.0
        %313 = vmatprep.subr.mxu0 0.0
        %314 = vmatpush1.msra.mxu0 0.0
        %315 = vmatprep.subr.mxu0 0.0
        %316 = vmatpush1.msra.mxu0 0.0
        %317 = vmatprep.subr.mxu0 0.0
        %318 = vmatpush1.msra.mxu0 0.0
        %319 = vmatprep.mubr.f32.mxu0 0.0
        %320 = vmatmul.mubr.f32.gmra.mrb[0].mxu0 %v182
        %v321 = vpop.f32.mrb[0].mxu0
        %v322 = vadd.f32 0.0, %v321
        %v323 = vpop.f32.mrb[0].mxu0
        %v324 = vadd.f32 0.0, %v323
        %325 = vdwg.mxu0
        %v330 = vrot.slane %v251, 4
        %v331 = vrot.slane %v253, 4
        %v332 = vrot.slane %v322, 4
        %v333 = vrot.slane %v324, 4
        %vm338 = vcmask 1043456
        %v339 = vsel %vm338, %v175, %v330
        %v340 = vsel %vm338, %v176, %v331
        %v341 = vsel %vm338, %v177, %v332
        %v342 = vsel %vm338, %v178, %v333
        %343 = vst [vmem:[%s172] sm:$0xff] %v339
        %344 = vst [vmem:[%s172 + $0x8] sm:$0xff] %v340
        %345 = vst [vmem:[%s172 + $0x10] sm:$0xff] %v341
        %346 = vst [vmem:[%s172 + $0x18] sm:$0xff] %v342
        %s347 = sand.u32 %s75, 1
        %s348 = scalar_lea.sflag [#allocation4], %s347
        %s349 = sand.u32 %s75, 1
        %s350 = smul.addr %s349, 32
        %s351 = scalar_lea.vmem [#allocation7], %s350
        // Predicated region
        $region37: #{tpu_custom_call.1} parent=27 // pred_check
          %p352 = pneg %p85
        $region38: #{tpu_custom_call.1} parent=27 // pred_check_branch
          %354 = sbr.rel (%p352) target = $region40
        $region39: #{tpu_custom_call.1} parent=27 // pred_region
          %s355 = smul.u32 4, %s20
          %s357 = ssub.s32 512, 512
          %358 = vsyncadd %s348, %s357
          %s359 = smul.addr %s355, 128
          %s360 = scalar_lea.hbm %s2, %s359
          %s362 = sshll.u32 %s351, 4
          %s363 = int_to_ptr.vmem [resolvable:$true] %s362
          %365 = dma.vmem_to_hbm [thread:$0]  %s363, 512, %s360, %s348
        $region40: #{tpu_custom_call.1} parent=27 // pred_fallthru
          _
      $region28: #{tpu_custom_call.1} parent=5 // pred_fallthru
        _
      %p366 = scmp.le.s32.totalorder 2, %s15
      // Predicated region
      $region41: #{tpu_custom_call.1} parent=5 // pred_check
        %p367 = pneg %p366
      $region42: #{tpu_custom_call.1} parent=5 // pred_check_branch
        %369 = sbr.rel (%p367) target = $region44
      $region43: #{tpu_custom_call.1} parent=5 // pred_region
        %s370 = ssub.s32 %s15, 2
        // Predicated region
        $region45: #{tpu_custom_call.1} parent=43 // pred_check
          %p371 = pneg %p91
        $region46: #{tpu_custom_call.1} parent=43 // pred_check_branch
          %373 = sbr.rel (%p371) target = $region48
        $region47: #{tpu_custom_call.1} parent=43 // pred_region
          %s374 = sand.u32 %s76, 1
          %s375 = scalar_lea.sflag [#allocation4], %s374
          %s376 = sand.u32 %s76, 1
          %s377 = smul.addr %s376, 32
          %s378 = scalar_lea.vmem [#allocation7], %s377
          %379 = dma.done %s375, 512
        $region48: #{tpu_custom_call.1} parent=43 // pred_fallthru
          _
      $region44: #{tpu_custom_call.1} parent=5 // pred_fallthru
        _
    $region6: #{tpu_custom_call.1} parent=1 // loop_footer
      %s19 = sadd.s32 1, %s15
    $region7: #{tpu_custom_call.1} parent=1 // loop_footer_branch
      %14 = sbr.rel target = $region3
    $region8: #{tpu_custom_call.1} parent=1 // loop_exit
      _
    %380 = vsyncpa [#allocation3], 1
    %s381 = scalar_lea.sflag [#allocation3], 1
    %382 = vsyncpa %s381, 1
    %383 = vsyncpa [#allocation6], 1
    %s384 = scalar_lea.sflag [#allocation6], 1
    %385 = vsyncpa %s384, 1
    %386 = vsyncpa [#allocation4], 1
    %s387 = scalar_lea.sflag [#allocation4], 1
    %388 = vsyncpa %s387, 1

</llo_original>
